<compile_context>
chip_gen: v5e
topology: v5e:2x2
jax: 0.10.0
libtpu: 0.0.40
codegen_flags: <defaults>
</compile_context>

<pallas_src>
import functools

import jax
import jax.numpy as jnp
import numpy as np
from jax.experimental import pallas as pl
from jax.experimental.pallas import tpu as pltpu

# Finite stand-in for -inf: keeps fully padded rows NaN-free and is robust to
# the sign of `scaling` (mask is applied after scaling).
_NEG_BIG = -1e30


def _att_forward_kernel(pre_ref, enc_ref, dec_ref, win_ref, gsum_ref, mask_ref,
                        wdec_ref, benc_ref, m_ref, wg_ref, bg_ref,
                        c_ref, w_ref, *, scaling):
    Bb, T, A = pre_ref.shape
    K = m_ref.shape[0]

    # mlp_dec(dec_z) folded with the mlp_enc bias -> one (Bb, A) bias row per b.
    dec = dec_ref[...][:, 0, :]                                            # (Bb, D)
    bias = jnp.dot(dec, wdec_ref[...],
                   preferred_element_type=jnp.float32) + benc_ref[...]     # (Bb, A)

    # loc_conv + mlp_att folded into one MXU matmul on im2col windows of att_prev.
    win = win_ref[...].reshape(Bb * T, K)
    att_proj = jnp.dot(win, m_ref[...],
                       preferred_element_type=jnp.float32).reshape(Bb, T, A)

    z = jnp.tanh(pre_ref[...] + att_proj + bias[:, None, :])               # (Bb, T, A)

    # gvec as elementwise-mul + lane reduction over A (avoids an N=1 MXU matmul,
    # result is lane-dense in T).
    e = jnp.sum(z * wg_ref[...][None, :, :], axis=-1) + bg_ref[...]        # (Bb, T)

    # Masked, scaled softmax over T (T on the lane axis).
    mask = mask_ref[...][:, 0, :]                                          # (Bb, T)
    se = jnp.where(mask > 0.5, scaling * e, _NEG_BIG)
    e_max = jnp.max(se, axis=-1, keepdims=True)
    p = jnp.exp(se - e_max)
    w_soft = p * pl.reciprocal(jnp.sum(p, axis=-1, keepdims=True), approx=True)

    # Forward-attention recombination:
    #   w = L1-normalize(clamp((att_prev + shift(att_prev)) * w_soft, 1e-6)).
    w_tilde = jnp.maximum(gsum_ref[...][:, 0, :] * w_soft, 1e-6)           # (Bb, T)
    w = w_tilde / jnp.sum(w_tilde, axis=-1, keepdims=True)

    # Context: c = w @ enc_h  (batched (1, T) x (T, E) matmul on the MXU).
    c = jnp.einsum('bqt,bte->bqe', w[:, None, :], enc_ref[...],
                   preferred_element_type=jnp.float32)                     # (Bb, 1, E)

    c_ref[...] = c.astype(c_ref.dtype)
    w_ref[...] = w[:, None, :].astype(w_ref.dtype)


def precompute_enc_h(enc_hs_pad, w_enc):
    """Decoder-step-invariant mlp_enc matmul (the module's self.pre_compute_enc_h).

    Hoisted out of the per-step Pallas kernel: it is the only large matmul and
    does not depend on dec_z / att_prev, so recomputing it every decoder step
    is wasted MXU time and HBM traffic.  (mlp_enc's bias is folded with
    mlp_dec(dec_z) inside the kernel instead.)
    """
    return jnp.einsum('bte,ea->bta', enc_hs_pad.astype(jnp.float32),
                      w_enc.astype(jnp.float32))


def _pick_block_b(B, T, E, A, K, D, vmem_budget_bytes=20 * 1024 * 1024):
    """Largest batch block that (a) leaves >=2 grid steps so both v7x
    TensorCores get work and (b) keeps double-buffered f32 blocks under a VMEM
    budget sized for v7x's smaller (64 MiB physical / ~32 MiB scoped) VMEM."""
    per_b = 4 * (T * (E + A + K + 2) + D + E + T) * 2   # in+out, double-buffered
    cap = max(1, vmem_budget_bytes // max(per_b, 1))
    if B >= 2:
        cap = min(cap, B // 2)
    cap = int(max(1, min(cap, B)))
    for d in range(cap, 0, -1):
        if B % d == 0:
            return d
    return 1


def att_forward_step_pallas(pre_enc, enc_hs_pad, dec_z, att_prev, valid_mask,
                            params, scaling=1.0, block_b=None):
    """One decoder step of AttForward given the cached pre_compute_enc_h."""
    B, T, E = enc_hs_pad.shape
    A = pre_enc.shape[-1]
    D = dec_z.shape[-1]
    K = params['w_conv_kc'].shape[0]
    filts = (K - 1) // 2
    f32 = jnp.float32

    pre_enc = pre_enc.astype(f32)
    enc = enc_hs_pad.astype(f32)
    dec3 = dec_z.astype(f32)[:, None, :]                                   # (B, 1, D)
    prev = att_prev.astype(f32)

    # Fold loc_conv with mlp_att: M[k, a] = sum_c conv_w[c, 0, 0, k] * W_att[c, a].
    M = params['w_conv_kc'].astype(f32) @ params['w_att'].astype(f32)      # (K, A)

    # im2col windows of att_prev ("same" padding): windows[b,t,k] = prev[b, t+k-F].
    prev_pad = jnp.pad(prev, ((0, 0), (filts, filts)))
    windows = jnp.stack([prev_pad[:, k:k + T] for k in range(K)], axis=-1)  # (B, T, K)

    # Forward-attention term att_prev + shift-right(att_prev), lane-dense (B, 1, T).
    prev_shift = jnp.pad(prev, ((0, 0), (1, 0)))[:, :-1]
    gsum = (prev + prev_shift)[:, None, :]

    mask3 = valid_mask.astype(f32)[:, None, :]                              # (B, 1, T)

    if block_b is None:
        block_b = _pick_block_b(B, T, E, A, K, D)
    assert B % block_b == 0, "batch must be divisible by block_b"
    nb = B // block_b

    kernel = functools.partial(_att_forward_kernel, scaling=float(scaling))

    def batched(shape):
        return pl.BlockSpec((block_b,) + shape, lambda i: (i, 0, 0))

    def const(shape):
        # Constant-index weight blocks (tiny here).  For large weights one
        # would single-buffer them with pipeline_mode=pl.Buffered(1) to halve
        # their VMEM footprint; omitted since they are a few KiB at these sizes.
        return pl.BlockSpec(shape, lambda i: (0, 0))

    grid_spec = pltpu.PrefetchScalarGridSpec(
        num_scalar_prefetch=0,
        grid=(nb,),
        in_specs=[
            batched((T, A)),        # pre_compute_enc_h
            batched((T, E)),        # enc_h
            batched((1, D)),        # dec_z
            batched((T, K)),        # im2col(att_prev)
            batched((1, T)),        # att_prev + shifted att_prev (lane-dense)
            batched((1, T)),        # valid mask (lane-dense)
            const((D, A)),          # W_dec
            const((1, A)),          # b_enc
            const((K, A)),          # folded conv / mlp_att matrix M
            const((1, A)),          # gvec weight row
            const((1, 1)),          # gvec bias
        ],
        out_specs=[
            batched((1, E)),        # context c
            batched((1, T)),        # attention weights w (lane-dense store)
        ],
    )

    c, w = pl.pallas_call(
        kernel,
        out_shape=(jax.ShapeDtypeStruct((B, 1, E), f32),
                   jax.ShapeDtypeStruct((B, 1, T), f32)),
        grid_spec=grid_spec,
        compiler_params=pltpu.CompilerParams(
            dimension_semantics=("parallel",),
            vmem_limit_bytes=32 * 1024 * 1024),
    )(pre_enc, enc, dec3, windows, gsum, mask3,
      params['w_dec'].astype(f32), params['b_enc'].astype(f32), M,
      params['w_gvec'].astype(f32), params['b_gvec'].astype(f32))

    return c.reshape(B, E), w.reshape(B, T)


def att_forward_pallas(enc_hs_pad, enc_hs_len, dec_z, att_prev, params,
                       scaling=1.0, pre_enc=None, block_b=None):
    """Mirrors AttForward.forward.  `pre_enc` plays the role of the module's
    cached self.pre_compute_enc_h: compute it once per utterance with
    precompute_enc_h() and pass it back in across decoder steps."""
    B, T, _ = enc_hs_pad.shape
    if pre_enc is None:
        pre_enc = precompute_enc_h(enc_hs_pad, params['w_enc'])
    if dec_z is None:
        dec_z = jnp.zeros((B, params['w_dec'].shape[0]), jnp.float32)
    if att_prev is None:
        att_prev = jnp.zeros((B, T), jnp.float32).at[:, 0].set(1.0)
    valid_mask = (jnp.arange(T)[None, :]
                  < jnp.asarray(enc_hs_len)[:, None]).astype(jnp.float32)
    # TODO(synk): last_attended_idx / _apply_attention_constraint is per-step,
    # batch-1-only host-side control flow; not implemented in the kernel.
    return att_forward_step_pallas(pre_enc, enc_hs_pad, dec_z, att_prev,
                                   valid_mask, params, scaling, block_b)


def reference_forward(enc, enc_len, dec, att_prev, p, scaling):
    """Pure-JAX port of AttForward.forward (PyTorch) for verification."""
    B, T, _ = enc.shape
    pre = jnp.einsum('bte,ea->bta', enc, p['w_enc']) + p['b_enc'][0]
    dec_proj = dec @ p['w_dec']                                            # (B, A)
    K = p['w_conv_kc'].shape[0]
    filts = (K - 1) // 2
    prev_pad = jnp.pad(att_prev, ((0, 0), (filts, filts)))
    windows = jnp.stack([prev_pad[:, k:k + T] for k in range(K)], axis=-1)  # (B,T,K)
    att_conv = jnp.einsum('btk,kc->btc', windows, p['w_conv_kc'])          # loc_conv
    att_conv = jnp.einsum('btc,ca->bta', att_conv, p['w_att'])             # mlp_att
    z = jnp.tanh(pre + dec_proj[:, None, :] + att_conv)
    e = jnp.einsum('bta,a->bt', z, p['w_gvec'][0]) + p['b_gvec'][0, 0]
    valid = jnp.arange(T)[None, :] < enc_len[:, None]
    e = jnp.where(valid, e, -jnp.inf)
    w = jax.nn.softmax(scaling * e, axis=1)
    prev_shift = jnp.pad(att_prev, ((0, 0), (1, 0)))[:, :-1]
    w = jnp.maximum((att_prev + prev_shift) * w, 1e-6)
    w = w / jnp.sum(w, axis=1, keepdims=True)
    c = jnp.einsum('bt,bte->be', w, enc)
    return c, w


if __name__ == "__main__":
    B, T = 2, 16
    eprojs, dunits, att_dim = 32, 32, 32
    aconv_chans, aconv_filts = 4, 3
    K = 2 * aconv_filts + 1

    key = jax.random.PRNGKey(0)
    ks = jax.random.split(key, 9)
    params = dict(
        w_enc=0.1 * jax.random.normal(ks[0], (eprojs, att_dim), jnp.float32),
        b_enc=0.1 * jax.random.normal(ks[1], (1, att_dim), jnp.float32),
        w_dec=0.1 * jax.random.normal(ks[2], (dunits, att_dim), jnp.float32),
        w_att=0.1 * jax.random.normal(ks[3], (aconv_chans, att_dim), jnp.float32),
        # torch Conv2d weight (C, 1, 1, K) stored transposed as (K, C).
        w_conv_kc=0.1 * jax.random.normal(ks[4], (K, aconv_chans), jnp.float32),
        # torch Linear(att_dim, 1).weight is (1, att_dim); kept as a row.
        w_gvec=0.1 * jax.random.normal(ks[5], (1, att_dim), jnp.float32),
        b_gvec=0.1 * jax.random.normal(ks[6], (1, 1), jnp.float32),
    )

    enc_hs_pad = jax.random.normal(ks[7], (B, T, eprojs), jnp.float32)
    dec_z = jax.random.normal(ks[8], (B, dunits), jnp.float32)
    enc_hs_len = jnp.array([16, 12], dtype=jnp.int32)

    # First decoder step: att_prev is None -> module default (1.0 at t=0).
    att_prev = jnp.zeros((B, T), jnp.float32).at[:, 0].set(1.0)

    # Step-invariant cache (the module's self.pre_compute_enc_h), computed once.
    pre_enc = precompute_enc_h(enc_hs_pad, params['w_enc'])

    c, w = att_forward_pallas(enc_hs_pad, enc_hs_len, dec_z, att_prev, params,
                              scaling=1.0, pre_enc=pre_enc)
    jax.block_until_ready((c, w))

    c_ref, w_ref = reference_forward(enc_hs_pad, enc_hs_len, dec_z, att_prev,
                                     params, 1.0)
    assert np.allclose(np.asarray(c), np.asarray(c_ref), atol=1e-4, rtol=1e-4), \
        float(np.max(np.abs(np.asarray(c) - np.asarray(c_ref))))
    assert np.allclose(np.asarray(w), np.asarray(w_ref), atol=1e-4, rtol=1e-4), \
        float(np.max(np.abs(np.asarray(w) - np.asarray(w_ref))))

    print("KERNEL_OK")
</pallas_src>

<mosaic_0001>
module attributes {stable_mosaic.version = 11 : i64} {
  func.func @_att_forward_kernel(%arg0: i32, %arg1: memref<1x16x32xf32, #tpu.memory_space<vmem>>, %arg2: memref<1x16x32xf32, #tpu.memory_space<vmem>>, %arg3: memref<1x1x32xf32, #tpu.memory_space<vmem>>, %arg4: memref<1x16x7xf32, #tpu.memory_space<vmem>>, %arg5: memref<1x1x16xf32, #tpu.memory_space<vmem>>, %arg6: memref<1x1x16xf32, #tpu.memory_space<vmem>>, %arg7: memref<32x32xf32, #tpu.memory_space<vmem>>, %arg8: memref<1x32xf32, #tpu.memory_space<vmem>>, %arg9: memref<7x32xf32, #tpu.memory_space<vmem>>, %arg10: memref<1x32xf32, #tpu.memory_space<vmem>>, %arg11: memref<1x1xf32, #tpu.memory_space<vmem>>, %arg12: memref<1x1x32xf32, #tpu.memory_space<vmem>>, %arg13: memref<1x1x16xf32, #tpu.memory_space<vmem>>) attributes {dimension_semantics = [#tpu.dimension_semantics<parallel>], iteration_bounds = array<i64: 2>, scalar_prefetch = 0 : i64, scratch_operands = 0 : i64, tpu.core_type = #tpu.core_type<tc>, window_params = [{transform_indices = @transform_0, window_bounds = array<i64: 1, 16, 32>}, {transform_indices = @transform_1, window_bounds = array<i64: 1, 16, 32>}, {transform_indices = @transform_2, window_bounds = array<i64: 1, 1, 32>}, {transform_indices = @transform_3, window_bounds = array<i64: 1, 16, 7>}, {transform_indices = @transform_4, window_bounds = array<i64: 1, 1, 16>}, {transform_indices = @transform_5, window_bounds = array<i64: 1, 1, 16>}, {pipeline_mode = #tpu.pipeline_mode<synchronous>, transform_indices = @transform_6, window_bounds = array<i64: 32, 32>}, {pipeline_mode = #tpu.pipeline_mode<synchronous>, transform_indices = @transform_7, window_bounds = array<i64: 1, 32>}, {pipeline_mode = #tpu.pipeline_mode<synchronous>, transform_indices = @transform_8, window_bounds = array<i64: 7, 32>}, {pipeline_mode = #tpu.pipeline_mode<synchronous>, transform_indices = @transform_9, window_bounds = array<i64: 1, 32>}, {pipeline_mode = #tpu.pipeline_mode<synchronous>, transform_indices = @transform_10, window_bounds = array<i64: 1, 1>}, {transform_indices = @transform_11, window_bounds = array<i64: 1, 1, 32>}, {transform_indices = @transform_12, window_bounds = array<i64: 1, 1, 16>}]} {
    %c0 = arith.constant 0 : index
    %c0_0 = arith.constant 0 : index
    %c0_1 = arith.constant 0 : index
    %0 = vector.load %arg3[%c0, %c0_0, %c0_1] : memref<1x1x32xf32, #tpu.memory_space<vmem>>, vector<1x1x32xf32>
    %1 = vector.shape_cast %0 : vector<1x1x32xf32> to vector<1x32xf32>
    %c0_2 = arith.constant 0 : index
    %c0_3 = arith.constant 0 : index
    %2 = vector.load %arg7[%c0_2, %c0_3] : memref<32x32xf32, #tpu.memory_space<vmem>>, vector<32x32xf32>
    %cst = arith.constant dense<0.000000e+00> : vector<1x32xf32>
    %3 = tpu.matmul %1, %2, %cst {dimension_numbers = #tpu.dot_dimension_numbers<[1], [0], [0], [1], [0, 0, 1, 1], [], []>} : vector<1x32xf32>, vector<32x32xf32>, vector<1x32xf32> -> vector<1x32xf32>
    %c0_4 = arith.constant 0 : index
    %c0_5 = arith.constant 0 : index
    %4 = vector.load %arg8[%c0_4, %c0_5] : memref<1x32xf32, #tpu.memory_space<vmem>>, vector<1x32xf32>
    %5 = arith.addf %3, %4 : vector<1x32xf32>
    %c0_6 = arith.constant 0 : index
    %c0_7 = arith.constant 0 : index
    %c0_8 = arith.constant 0 : index
    %6 = vector.load %arg4[%c0_6, %c0_7, %c0_8] : memref<1x16x7xf32, #tpu.memory_space<vmem>>, vector<1x16x7xf32>
    %7 = vector.shape_cast %6 : vector<1x16x7xf32> to vector<16x7xf32>
    %c0_9 = arith.constant 0 : index
    %c0_10 = arith.constant 0 : index
    %8 = vector.load %arg9[%c0_9, %c0_10] : memref<7x32xf32, #tpu.memory_space<vmem>>, vector<7x32xf32>
    %cst_11 = arith.constant dense<0.000000e+00> : vector<16x32xf32>
    %9 = tpu.matmul %7, %8, %cst_11 {dimension_numbers = #tpu.dot_dimension_numbers<[1], [0], [0], [1], [0, 0, 1, 1], [], []>} : vector<16x7xf32>, vector<7x32xf32>, vector<16x32xf32> -> vector<16x32xf32>
    %10 = vector.shape_cast %9 : vector<16x32xf32> to vector<1x16x32xf32>
    %c0_12 = arith.constant 0 : index
    %c0_13 = arith.constant 0 : index
    %c0_14 = arith.constant 0 : index
    %11 = vector.load %arg1[%c0_12, %c0_13, %c0_14] : memref<1x16x32xf32, #tpu.memory_space<vmem>>, vector<1x16x32xf32>
    %12 = arith.addf %11, %10 : vector<1x16x32xf32>
    %13 = vector.shape_cast %5 : vector<1x32xf32> to vector<1x1x32xf32>
    %14 = vector.broadcast %13 : vector<1x1x32xf32> to vector<1x16x32xf32>
    %15 = arith.addf %12, %14 : vector<1x16x32xf32>
    %16 = math.tanh %15 : vector<1x16x32xf32>
    %c0_15 = arith.constant 0 : index
    %c0_16 = arith.constant 0 : index
    %17 = vector.load %arg10[%c0_15, %c0_16] : memref<1x32xf32, #tpu.memory_space<vmem>>, vector<1x32xf32>
    %18 = vector.shape_cast %17 : vector<1x32xf32> to vector<1x1x32xf32>
    %19 = vector.broadcast %18 : vector<1x1x32xf32> to vector<1x16x32xf32>
    %20 = arith.mulf %16, %19 : vector<1x16x32xf32>
    %cst_17 = arith.constant dense<0.000000e+00> : vector<1x16xf32>
    %21 = vector.multi_reduction <add>, %20, %cst_17 [2] : vector<1x16x32xf32> to vector<1x16xf32>
    %c0_18 = arith.constant 0 : index
    %c0_19 = arith.constant 0 : index
    %22 = vector.load %arg11[%c0_18, %c0_19] : memref<1x1xf32, #tpu.memory_space<vmem>>, vector<1x1xf32>
    %23 = vector.broadcast %22 : vector<1x1xf32> to vector<1x16xf32>
    %24 = arith.addf %21, %23 : vector<1x16xf32>
    %c0_20 = arith.constant 0 : index
    %c0_21 = arith.constant 0 : index
    %c0_22 = arith.constant 0 : index
    %25 = vector.load %arg6[%c0_20, %c0_21, %c0_22] : memref<1x1x16xf32, #tpu.memory_space<vmem>>, vector<1x1x16xf32>
    %26 = vector.shape_cast %25 : vector<1x1x16xf32> to vector<1x16xf32>
    %cst_23 = arith.constant 5.000000e-01 : f32
    %27 = vector.broadcast %cst_23 : f32 to vector<1x16xf32>
    %28 = arith.cmpf ogt, %26, %27 : vector<1x16xf32>
    %cst_24 = arith.constant 1.000000e+00 : f32
    %29 = vector.broadcast %cst_24 : f32 to vector<1x16xf32>
    %30 = arith.mulf %29, %24 : vector<1x16xf32>
    %cst_25 = arith.constant -1.000000e+30 : f32
    %31 = vector.broadcast %cst_25 : f32 to vector<1x16xf32>
    %32 = arith.select %28, %30, %31 : vector<1x16xi1>, vector<1x16xf32>
    %cst_26 = arith.constant dense<0xFF800000> : vector<1xf32>
    %33 = vector.multi_reduction <maximumf>, %32, %cst_26 [1] : vector<1x16xf32> to vector<1xf32>
    %34 = vector.shape_cast %33 : vector<1xf32> to vector<1x1xf32>
    %35 = vector.broadcast %34 : vector<1x1xf32> to vector<1x16xf32>
    %36 = arith.subf %32, %35 : vector<1x16xf32>
    %37 = math.exp %36 : vector<1x16xf32>
    %cst_27 = arith.constant dense<0.000000e+00> : vector<1xf32>
    %38 = vector.multi_reduction <add>, %37, %cst_27 [1] : vector<1x16xf32> to vector<1xf32>
    %39 = vector.shape_cast %38 : vector<1xf32> to vector<1x1xf32>
    %40 = tpu.reciprocal %39 {approx = true} : vector<1x1xf32> -> vector<1x1xf32>
    %41 = vector.broadcast %40 : vector<1x1xf32> to vector<1x16xf32>
    %42 = arith.mulf %37, %41 : vector<1x16xf32>
    %c0_28 = arith.constant 0 : index
    %c0_29 = arith.constant 0 : index
    %c0_30 = arith.constant 0 : index
    %43 = vector.load %arg5[%c0_28, %c0_29, %c0_30] : memref<1x1x16xf32, #tpu.memory_space<vmem>>, vector<1x1x16xf32>
    %44 = vector.shape_cast %43 : vector<1x1x16xf32> to vector<1x16xf32>
    %45 = arith.mulf %44, %42 : vector<1x16xf32>
    %cst_31 = arith.constant 9.99999997E-7 : f32
    %46 = vector.broadcast %cst_31 : f32 to vector<1x16xf32>
    %47 = arith.maximumf %45, %46 : vector<1x16xf32>
    %cst_32 = arith.constant dense<0.000000e+00> : vector<1xf32>
    %48 = vector.multi_reduction <add>, %47, %cst_32 [1] : vector<1x16xf32> to vector<1xf32>
    %49 = vector.shape_cast %48 : vector<1xf32> to vector<1x1xf32>
    %50 = vector.broadcast %49 : vector<1x1xf32> to vector<1x16xf32>
    %51 = arith.divf %47, %50 : vector<1x16xf32>
    %52 = vector.shape_cast %51 : vector<1x16xf32> to vector<1x1x16xf32>
    %c0_33 = arith.constant 0 : index
    %c0_34 = arith.constant 0 : index
    %c0_35 = arith.constant 0 : index
    %53 = vector.load %arg2[%c0_33, %c0_34, %c0_35] : memref<1x16x32xf32, #tpu.memory_space<vmem>>, vector<1x16x32xf32>
    "tpu.trace_start"() <{level = 10 : i32, message = "bqt,bte->bqe"}> : () -> ()
    %cst_36 = arith.constant dense<0.000000e+00> : vector<1x1x32xf32>
    %54 = tpu.matmul %52, %53, %cst_36 {dimension_numbers = #tpu.dot_dimension_numbers<[2], [1], [1], [2], [0, 0, 0, 1, 1, 2], [0], [0]>} : vector<1x1x16xf32>, vector<1x16x32xf32>, vector<1x1x32xf32> -> vector<1x1x32xf32>
    "tpu.trace_stop"() : () -> ()
    %c0_37 = arith.constant 0 : index
    %c0_38 = arith.constant 0 : index
    %c0_39 = arith.constant 0 : index
    %55 = vector.load %arg12[%c0_37, %c0_38, %c0_39] : memref<1x1x32xf32, #tpu.memory_space<vmem>>, vector<1x1x32xf32>
    tpu.vector_store %arg12[%c0_37, %c0_38, %c0_39], %54 {strides = array<i32>} : memref<1x1x32xf32, #tpu.memory_space<vmem>>, vector<1x1x32xf32>,
    %56 = vector.shape_cast %51 : vector<1x16xf32> to vector<1x1x16xf32>
    %c0_40 = arith.constant 0 : index
    %c0_41 = arith.constant 0 : index
    %c0_42 = arith.constant 0 : index
    %57 = vector.load %arg13[%c0_40, %c0_41, %c0_42] : memref<1x1x16xf32, #tpu.memory_space<vmem>>, vector<1x1x16xf32>
    tpu.vector_store %arg13[%c0_40, %c0_41, %c0_42], %56 {strides = array<i32>} : memref<1x1x16xf32, #tpu.memory_space<vmem>>, vector<1x1x16xf32>,
    return
  }
  func.func @transform_0(%arg0: i32) -> (i32, i32, i32) {
    %c0_i32 = arith.constant 0 : i32
    %c0_i32_0 = arith.constant 0 : i32
    %c0_i32_1 = arith.constant 0 : i32
    return %arg0, %c0_i32, %c0_i32_0 : i32, i32, i32
  }
  func.func @transform_1(%arg0: i32) -> (i32, i32, i32) {
    %c0_i32 = arith.constant 0 : i32
    %c0_i32_0 = arith.constant 0 : i32
    %c0_i32_1 = arith.constant 0 : i32
    return %arg0, %c0_i32, %c0_i32_0 : i32, i32, i32
  }
  func.func @transform_2(%arg0: i32) -> (i32, i32, i32) {
    %c0_i32 = arith.constant 0 : i32
    %c0_i32_0 = arith.constant 0 : i32
    %c0_i32_1 = arith.constant 0 : i32
    return %arg0, %c0_i32, %c0_i32_0 : i32, i32, i32
  }
  func.func @transform_3(%arg0: i32) -> (i32, i32, i32) {
    %c0_i32 = arith.constant 0 : i32
    %c0_i32_0 = arith.constant 0 : i32
    %c0_i32_1 = arith.constant 0 : i32
    return %arg0, %c0_i32, %c0_i32_0 : i32, i32, i32
  }
  func.func @transform_4(%arg0: i32) -> (i32, i32, i32) {
    %c0_i32 = arith.constant 0 : i32
    %c0_i32_0 = arith.constant 0 : i32
    %c0_i32_1 = arith.constant 0 : i32
    return %arg0, %c0_i32, %c0_i32_0 : i32, i32, i32
  }
  func.func @transform_5(%arg0: i32) -> (i32, i32, i32) {
    %c0_i32 = arith.constant 0 : i32
    %c0_i32_0 = arith.constant 0 : i32
    %c0_i32_1 = arith.constant 0 : i32
    return %arg0, %c0_i32, %c0_i32_0 : i32, i32, i32
  }
  func.func @transform_6(%arg0: i32) -> (i32, i32) {
    %c0_i32 = arith.constant 0 : i32
    %c0_i32_0 = arith.constant 0 : i32
    %c0_i32_1 = arith.constant 0 : i32
    return %c0_i32, %c0_i32_0 : i32, i32
  }
  func.func @transform_7(%arg0: i32) -> (i32, i32) {
    %c0_i32 = arith.constant 0 : i32
    %c0_i32_0 = arith.constant 0 : i32
    %c0_i32_1 = arith.constant 0 : i32
    return %c0_i32, %c0_i32_0 : i32, i32
  }
  func.func @transform_8(%arg0: i32) -> (i32, i32) {
    %c0_i32 = arith.constant 0 : i32
    %c0_i32_0 = arith.constant 0 : i32
    %c0_i32_1 = arith.constant 0 : i32
    return %c0_i32, %c0_i32_0 : i32, i32
  }
  func.func @transform_9(%arg0: i32) -> (i32, i32) {
    %c0_i32 = arith.constant 0 : i32
    %c0_i32_0 = arith.constant 0 : i32
    %c0_i32_1 = arith.constant 0 : i32
    return %c0_i32, %c0_i32_0 : i32, i32
  }
  func.func @transform_10(%arg0: i32) -> (i32, i32) {
    %c0_i32 = arith.constant 0 : i32
    %c0_i32_0 = arith.constant 0 : i32
    %c0_i32_1 = arith.constant 0 : i32
    return %c0_i32, %c0_i32_0 : i32, i32
  }
  func.func @transform_11(%arg0: i32) -> (i32, i32, i32) {
    %c0_i32 = arith.constant 0 : i32
    %c0_i32_0 = arith.constant 0 : i32
    %c0_i32_1 = arith.constant 0 : i32
    return %arg0, %c0_i32, %c0_i32_0 : i32, i32, i32
  }
  func.func @transform_12(%arg0: i32) -> (i32, i32, i32) {
    %c0_i32 = arith.constant 0 : i32
    %c0_i32_0 = arith.constant 0 : i32
    %c0_i32_1 = arith.constant 0 : i32
    return %arg0, %c0_i32, %c0_i32_0 : i32, i32, i32
  }
}

</mosaic_0001>

<llo_original>
// kernel: tpu_custom_call.1
$region0: #{tpu_custom_call.1}
  #allocation0 [shape = 'u32[]', space=smem, size = 0x4, offset = 0x4, fixed_abs, tag = 'smem constant byte address 0x4 - core index']
  #allocation1 [shape = 'u32[72,128]{1,0:T(1,128)}', space=vmem, size = 0x9000, scoped, tag = 'internal scratch']
  #allocation2 [shape = 'f32[1,1]{1,0:T(1,128)S(1)}', space=vmem, size = 0x200, scoped, tag = 'scoped memory for tpu_custom_call.1']
  %s0 = inlined_call_operand.vmem [shape: f32[2,16,32], index: 0, kind: input, shape index: {}]
  %s1 = inlined_call_operand.hbm [shape: f32[2,16,32], index: 1, kind: input, shape index: {}]
  %s2 = inlined_call_operand.vmem [shape: f32[2,1,32], index: 2, kind: input, shape index: {}]
  %s3 = inlined_call_operand.vmem [shape: f32[2,16,7], index: 3, kind: input, shape index: {}]
  %s4 = inlined_call_operand.vmem [shape: f32[2,1,16], index: 4, kind: input, shape index: {}]
  %s5 = inlined_call_operand.vmem [shape: f32[2,1,16], index: 5, kind: input, shape index: {}]
  %s6 = inlined_call_operand.hbm [shape: f32[32,32], index: 6, kind: input, shape index: {}]
  %s7 = inlined_call_operand.vmem [shape: f32[1,32], index: 7, kind: input, shape index: {}]
  %s8 = inlined_call_operand.vmem [shape: f32[7,32], index: 8, kind: input, shape index: {}]
  %s9 = inlined_call_operand.vmem [shape: f32[1,32], index: 9, kind: input, shape index: {}]
  %s10 = inlined_call_operand.<no memory space> [shape: f32[1,1], index: 10, kind: input, shape index: {}]
  %s11 = inlined_call_operand.hbm [shape: f32[2,1,32], index: 11, kind: output, shape index: {0}]
  %s12 = inlined_call_operand.hbm [shape: f32[2,1,16], index: 12, kind: output, shape index: {1}]
  %13 = xla_tuple %s11, %s12
  %s14 = sld [smem:[#allocation0]]
  $region93: #{tpu_custom_call.1} parent=0
    _
  %s16 = ssub.s32 1, %s14
  %s17 = scalar_select 0, %s16, %s14
  %v18 = vstv %s10
  %19 = vst [vmem:[#allocation2] sm:$0x1] %v18
  $region1: #{tpu_custom_call.1} parent=0
    #allocation3 [shape = 'u8[16384]{0}', space=vmem, size = 0x4000, scoped, tag = 'input window, operand 1']
    #allocation4 [shape = 's32[2]{0}', space=sflag, size = 0x8, scoped, tag = 'scoped memory for tpu_custom_call.1']
    #allocation5 [shape = 's32[2]{0}', space=sflag, size = 0x8, scoped, tag = 'scoped memory for tpu_custom_call.1']
    #allocation6 [shape = 'u8[16384]{0}', space=vmem, size = 0x4000, scoped, tag = 'input window, operand 6, single buffered']
    #allocation7 [shape = 's32[1]{0}', space=sflag, size = 0x4, scoped, tag = 'scoped memory for tpu_custom_call.1']
    #allocation8 [shape = 'u8[1024]{0}', space=vmem, size = 0x400, scoped, tag = 'output window, operand 0']
    #allocation9 [shape = 'u8[1024]{0}', space=vmem, size = 0x400, scoped, tag = 'output window, operand 1']
    #allocation10 [shape = 's32[2]{0}', space=sflag, size = 0x8, scoped, tag = 'scoped memory for tpu_custom_call.1']
    %20 = vsyncpa [#allocation4], 0
    %s21 = scalar_lea.sflag [#allocation4], 1
    %22 = vsyncpa %s21, 0
    %23 = vsyncpa [#allocation7], 0
    %24 = vsyncpa [#allocation5], 0
    %s25 = scalar_lea.sflag [#allocation5], 1
    %26 = vsyncpa %s25, 0
    %27 = vsyncpa [#allocation10], 0
    %s28 = scalar_lea.sflag [#allocation10], 1
    %29 = vsyncpa %s28, 0
    loop: start=0, step=1, limit=4
    $region2: #{tpu_custom_call.1} parent=1 // loop_pre_header
      _
    $region3: #{tpu_custom_call.1} parent=1 // loop_header
      %s31 = sphi 0, %s35
      %p32 = scmp.ge.s32.totalorder %s31, 4
      %s41 = sphi 0, %s43
      %s44 = sphi 0, %s41
      %s45 = sphi 0, %s44
      %s61 = sphi 0, %s45
      %s67 = sphi 0, %s69
      %s70 = sphi 0, %s67
      %s71 = sphi 0, %s70
      %s87 = sphi 0, %s71
      %s93 = sphi 0, %s95
      %s96 = sphi 0, %s93
      %s97 = sphi 0, %s96
      %s113 = sphi 0, %s97
      %s119 = sphi 0, %s121
      %s122 = sphi 0, %s119
      %s123 = sphi 0, %s122
      %s139 = sphi 0, %s123
      %s145 = sphi 0, %s147
      %s148 = sphi 0, %s145
      %s149 = sphi 0, %s148
      %s165 = sphi 0, %s149
      %s171 = sphi 0, %s173
      %s174 = sphi 0, %s171
      %s175 = sphi 0, %s174
      %s191 = sphi 0, %s175
      %s195 = sphi 0, %s195
      %s197 = sphi 0, %s195
      %s198 = sphi 0, %s197
      %s212 = sphi 0, %s198
      %s216 = sphi 0, %s216
      %s218 = sphi 0, %s216
      %s219 = sphi 0, %s218
      %s233 = sphi 0, %s219
      %s237 = sphi 0, %s237
      %s239 = sphi 0, %s237
      %s240 = sphi 0, %s239
      %s254 = sphi 0, %s240
      %s258 = sphi 0, %s258
      %s260 = sphi 0, %s258
      %s261 = sphi 0, %s260
      %s275 = sphi 0, %s261
      %s279 = sphi 0, %s279
      %s281 = sphi 0, %s279
      %s282 = sphi 0, %s281
      %s296 = sphi 0, %s282
      %s302 = sphi 0, %s304
      %s305 = sphi 0, %s302
      %s306 = sphi 0, %s305
      %s322 = sphi 0, %s306
      %s328 = sphi 0, %s330
      %s331 = sphi 0, %s328
      %s332 = sphi 0, %s331
      %s348 = sphi 0, %s332
    $region4: #{tpu_custom_call.1} parent=1 // loop_header_branch
      %34 = sbr.rel (%p32) target = $region8
    $region5: #{tpu_custom_call.1} parent=1 // loop_body
      %s36 = ssub.s32 %s31, 1
      %s37 = ssub.s32 %s31, 2
      %s38 = sadd.s32 %s31, 1
      %s39 = ssub.s32 %s31, %s38
      %p40 = scmp.eq.s32.totalorder %s39, 0
      %s42 = sadd.s32 %s41, 1
      %s43 = scalar_select %p40, %s41, %s42
      %p46 = pneg %p40
      %p47 = scmp.eq.s32.totalorder %s31, 1
      %p48 = por %p46, %p47
      %p49 = scmp.ne.s32.totalorder %s41, %s44
      %p50 = scmp.eq.s32.totalorder %s31, 0
      %p51 = por %p49, %p50
      %p52 = scmp.ne.s32.totalorder %s41, %s44
      %p53 = scmp.eq.s32.totalorder %s36, 1
      %p54 = por %p52, %p53
      %p55 = scmp.ne.s32.totalorder %s44, %s45
      %p56 = scmp.eq.s32.totalorder %s36, 0
      %p57 = por %p55, %p56
      %p58 = scmp.ne.s32.totalorder %s44, %s45
      %p59 = scmp.eq.s32.totalorder %s37, 1
      %p60 = por %p58, %p59
      %p62 = scmp.ne.s32.totalorder %s45, %s61
      %p63 = scmp.eq.s32.totalorder %s37, 0
      %p64 = por %p62, %p63
      %s65 = ssub.s32 %s31, %s38
      %p66 = scmp.eq.s32.totalorder %s65, 0
      %s68 = sadd.s32 %s67, 1
      %s69 = scalar_select %p66, %s67, %s68
      %p72 = pneg %p66
      %p73 = scmp.eq.s32.totalorder %s31, 1
      %p74 = por %p72, %p73
      %p75 = scmp.ne.s32.totalorder %s67, %s70
      %p76 = scmp.eq.s32.totalorder %s31, 0
      %p77 = por %p75, %p76
      %p78 = scmp.ne.s32.totalorder %s67, %s70
      %p79 = scmp.eq.s32.totalorder %s36, 1
      %p80 = por %p78, %p79
      %p81 = scmp.ne.s32.totalorder %s70, %s71
      %p82 = scmp.eq.s32.totalorder %s36, 0
      %p83 = por %p81, %p82
      %p84 = scmp.ne.s32.totalorder %s70, %s71
      %p85 = scmp.eq.s32.totalorder %s37, 1
      %p86 = por %p84, %p85
      %p88 = scmp.ne.s32.totalorder %s71, %s87
      %p89 = scmp.eq.s32.totalorder %s37, 0
      %p90 = por %p88, %p89
      %s91 = ssub.s32 %s31, %s38
      %p92 = scmp.eq.s32.totalorder %s91, 0
      %s94 = sadd.s32 %s93, 1
      %s95 = scalar_select %p92, %s93, %s94
      %p98 = pneg %p92
      %p99 = scmp.eq.s32.totalorder %s31, 1
      %p100 = por %p98, %p99
      %p101 = scmp.ne.s32.totalorder %s93, %s96
      %p102 = scmp.eq.s32.totalorder %s31, 0
      %p103 = por %p101, %p102
      %p104 = scmp.ne.s32.totalorder %s93, %s96
      %p105 = scmp.eq.s32.totalorder %s36, 1
      %p106 = por %p104, %p105
      %p107 = scmp.ne.s32.totalorder %s96, %s97
      %p108 = scmp.eq.s32.totalorder %s36, 0
      %p109 = por %p107, %p108
      %p110 = scmp.ne.s32.totalorder %s96, %s97
      %p111 = scmp.eq.s32.totalorder %s37, 1
      %p112 = por %p110, %p111
      %p114 = scmp.ne.s32.totalorder %s97, %s113
      %p115 = scmp.eq.s32.totalorder %s37, 0
      %p116 = por %p114, %p115
      %s117 = ssub.s32 %s31, %s38
      %p118 = scmp.eq.s32.totalorder %s117, 0
      %s120 = sadd.s32 %s119, 1
      %s121 = scalar_select %p118, %s119, %s120
      %p124 = pneg %p118
      %p125 = scmp.eq.s32.totalorder %s31, 1
      %p126 = por %p124, %p125
      %p127 = scmp.ne.s32.totalorder %s119, %s122
      %p128 = scmp.eq.s32.totalorder %s31, 0
      %p129 = por %p127, %p128
      %p130 = scmp.ne.s32.totalorder %s119, %s122
      %p131 = scmp.eq.s32.totalorder %s36, 1
      %p132 = por %p130, %p131
      %p133 = scmp.ne.s32.totalorder %s122, %s123
      %p134 = scmp.eq.s32.totalorder %s36, 0
      %p135 = por %p133, %p134
      %p136 = scmp.ne.s32.totalorder %s122, %s123
      %p137 = scmp.eq.s32.totalorder %s37, 1
      %p138 = por %p136, %p137
      %p140 = scmp.ne.s32.totalorder %s123, %s139
      %p141 = scmp.eq.s32.totalorder %s37, 0
      %p142 = por %p140, %p141
      %s143 = ssub.s32 %s31, %s38
      %p144 = scmp.eq.s32.totalorder %s143, 0
      %s146 = sadd.s32 %s145, 1
      %s147 = scalar_select %p144, %s145, %s146
      %p150 = pneg %p144
      %p151 = scmp.eq.s32.totalorder %s31, 1
      %p152 = por %p150, %p151
      %p153 = scmp.ne.s32.totalorder %s145, %s148
      %p154 = scmp.eq.s32.totalorder %s31, 0
      %p155 = por %p153, %p154
      %p156 = scmp.ne.s32.totalorder %s145, %s148
      %p157 = scmp.eq.s32.totalorder %s36, 1
      %p158 = por %p156, %p157
      %p159 = scmp.ne.s32.totalorder %s148, %s149
      %p160 = scmp.eq.s32.totalorder %s36, 0
      %p161 = por %p159, %p160
      %p162 = scmp.ne.s32.totalorder %s148, %s149
      %p163 = scmp.eq.s32.totalorder %s37, 1
      %p164 = por %p162, %p163
      %p166 = scmp.ne.s32.totalorder %s149, %s165
      %p167 = scmp.eq.s32.totalorder %s37, 0
      %p168 = por %p166, %p167
      %s169 = ssub.s32 %s31, %s38
      %p170 = scmp.eq.s32.totalorder %s169, 0
      %s172 = sadd.s32 %s171, 1
      %s173 = scalar_select %p170, %s171, %s172
      %p176 = pneg %p170
      %p177 = scmp.eq.s32.totalorder %s31, 1
      %p178 = por %p176, %p177
      %p179 = scmp.ne.s32.totalorder %s171, %s174
      %p180 = scmp.eq.s32.totalorder %s31, 0
      %p181 = por %p179, %p180
      %p182 = scmp.ne.s32.totalorder %s171, %s174
      %p183 = scmp.eq.s32.totalorder %s36, 1
      %p184 = por %p182, %p183
      %p185 = scmp.ne.s32.totalorder %s174, %s175
      %p186 = scmp.eq.s32.totalorder %s36, 0
      %p187 = por %p185, %p186
      %p188 = scmp.ne.s32.totalorder %s174, %s175
      %p189 = scmp.eq.s32.totalorder %s37, 1
      %p190 = por %p188, %p189
      %p192 = scmp.ne.s32.totalorder %s175, %s191
      %p193 = scmp.eq.s32.totalorder %s37, 0
      %p194 = por %p192, %p193
      %s196 = sadd.s32 %s195, 1
      %p199 = scmp.eq.s32.totalorder %s31, 1
      %p200 = scmp.ne.s32.totalorder %s195, %s197
      %p201 = scmp.eq.s32.totalorder %s31, 0
      %p202 = por %p200, %p201
      %p203 = scmp.ne.s32.totalorder %s195, %s197
      %p204 = scmp.eq.s32.totalorder %s36, 1
      %p205 = por %p203, %p204
      %p206 = scmp.ne.s32.totalorder %s197, %s198
      %p207 = scmp.eq.s32.totalorder %s36, 0
      %p208 = por %p206, %p207
      %p209 = scmp.ne.s32.totalorder %s197, %s198
      %p210 = scmp.eq.s32.totalorder %s37, 1
      %p211 = por %p209, %p210
      %p213 = scmp.ne.s32.totalorder %s198, %s212
      %p214 = scmp.eq.s32.totalorder %s37, 0
      %p215 = por %p213, %p214
      %s217 = sadd.s32 %s216, 1
      %p220 = scmp.eq.s32.totalorder %s31, 1
      %p221 = scmp.ne.s32.totalorder %s216, %s218
      %p222 = scmp.eq.s32.totalorder %s31, 0
      %p223 = por %p221, %p222
      %p224 = scmp.ne.s32.totalorder %s216, %s218
      %p225 = scmp.eq.s32.totalorder %s36, 1
      %p226 = por %p224, %p225
      %p227 = scmp.ne.s32.totalorder %s218, %s219
      %p228 = scmp.eq.s32.totalorder %s36, 0
      %p229 = por %p227, %p228
      %p230 = scmp.ne.s32.totalorder %s218, %s219
      %p231 = scmp.eq.s32.totalorder %s37, 1
      %p232 = por %p230, %p231
      %p234 = scmp.ne.s32.totalorder %s219, %s233
      %p235 = scmp.eq.s32.totalorder %s37, 0
      %p236 = por %p234, %p235
      %s238 = sadd.s32 %s237, 1
      %p241 = scmp.eq.s32.totalorder %s31, 1
      %p242 = scmp.ne.s32.totalorder %s237, %s239
      %p243 = scmp.eq.s32.totalorder %s31, 0
      %p244 = por %p242, %p243
      %p245 = scmp.ne.s32.totalorder %s237, %s239
      %p246 = scmp.eq.s32.totalorder %s36, 1
      %p247 = por %p245, %p246
      %p248 = scmp.ne.s32.totalorder %s239, %s240
      %p249 = scmp.eq.s32.totalorder %s36, 0
      %p250 = por %p248, %p249
      %p251 = scmp.ne.s32.totalorder %s239, %s240
      %p252 = scmp.eq.s32.totalorder %s37, 1
      %p253 = por %p251, %p252
      %p255 = scmp.ne.s32.totalorder %s240, %s254
      %p256 = scmp.eq.s32.totalorder %s37, 0
      %p257 = por %p255, %p256
      %s259 = sadd.s32 %s258, 1
      %p262 = scmp.eq.s32.totalorder %s31, 1
      %p263 = scmp.ne.s32.totalorder %s258, %s260
      %p264 = scmp.eq.s32.totalorder %s31, 0
      %p265 = por %p263, %p264
      %p266 = scmp.ne.s32.totalorder %s258, %s260
      %p267 = scmp.eq.s32.totalorder %s36, 1
      %p268 = por %p266, %p267
      %p269 = scmp.ne.s32.totalorder %s260, %s261
      %p270 = scmp.eq.s32.totalorder %s36, 0
      %p271 = por %p269, %p270
      %p272 = scmp.ne.s32.totalorder %s260, %s261
      %p273 = scmp.eq.s32.totalorder %s37, 1
      %p274 = por %p272, %p273
      %p276 = scmp.ne.s32.totalorder %s261, %s275
      %p277 = scmp.eq.s32.totalorder %s37, 0
      %p278 = por %p276, %p277
      %s280 = sadd.s32 %s279, 1
      %p283 = scmp.eq.s32.totalorder %s31, 1
      %p284 = scmp.ne.s32.totalorder %s279, %s281
      %p285 = scmp.eq.s32.totalorder %s31, 0
      %p286 = por %p284, %p285
      %p287 = scmp.ne.s32.totalorder %s279, %s281
      %p288 = scmp.eq.s32.totalorder %s36, 1
      %p289 = por %p287, %p288
      %p290 = scmp.ne.s32.totalorder %s281, %s282
      %p291 = scmp.eq.s32.totalorder %s36, 0
      %p292 = por %p290, %p291
      %p293 = scmp.ne.s32.totalorder %s281, %s282
      %p294 = scmp.eq.s32.totalorder %s37, 1
      %p295 = por %p293, %p294
      %p297 = scmp.ne.s32.totalorder %s282, %s296
      %p298 = scmp.eq.s32.totalorder %s37, 0
      %p299 = por %p297, %p298
      %s300 = ssub.s32 %s31, %s38
      %p301 = scmp.eq.s32.totalorder %s300, 0
      %s303 = sadd.s32 %s302, 1
      %s304 = scalar_select %p301, %s302, %s303
      %p307 = pneg %p301
      %p308 = scmp.eq.s32.totalorder %s31, 1
      %p309 = por %p307, %p308
      %p310 = scmp.ne.s32.totalorder %s302, %s305
      %p311 = scmp.eq.s32.totalorder %s31, 0
      %p312 = por %p310, %p311
      %p313 = scmp.ne.s32.totalorder %s302, %s305
      %p314 = scmp.eq.s32.totalorder %s36, 1
      %p315 = por %p313, %p314
      %p316 = scmp.ne.s32.totalorder %s305, %s306
      %p317 = scmp.eq.s32.totalorder %s36, 0
      %p318 = por %p316, %p317
      %p319 = scmp.ne.s32.totalorder %s305, %s306
      %p320 = scmp.eq.s32.totalorder %s37, 1
      %p321 = por %p319, %p320
      %p323 = scmp.ne.s32.totalorder %s306, %s322
      %p324 = scmp.eq.s32.totalorder %s37, 0
      %p325 = por %p323, %p324
      %s326 = ssub.s32 %s31, %s38
      %p327 = scmp.eq.s32.totalorder %s326, 0
      %s329 = sadd.s32 %s328, 1
      %s330 = scalar_select %p327, %s328, %s329
      %p333 = pneg %p327
      %p334 = scmp.eq.s32.totalorder %s31, 1
      %p335 = por %p333, %p334
      %p336 = scmp.ne.s32.totalorder %s328, %s331
      %p337 = scmp.eq.s32.totalorder %s31, 0
      %p338 = por %p336, %p337
      %p339 = scmp.ne.s32.totalorder %s328, %s331
      %p340 = scmp.eq.s32.totalorder %s36, 1
      %p341 = por %p339, %p340
      %p342 = scmp.ne.s32.totalorder %s331, %s332
      %p343 = scmp.eq.s32.totalorder %s36, 0
      %p344 = por %p342, %p343
      %p345 = scmp.ne.s32.totalorder %s331, %s332
      %p346 = scmp.eq.s32.totalorder %s37, 1
      %p347 = por %p345, %p346
      %p349 = scmp.ne.s32.totalorder %s332, %s348
      %p350 = scmp.eq.s32.totalorder %s37, 0
      %p351 = por %p349, %p350
      %p352 = scmp.le.s32.totalorder 1, %s31
      %p353 = scmp.lt.s32.totalorder %s31, 3
      %p354 = pnand %p352, %p353
      %p355 = pneg %p354
      // Predicated region
      $region9: #{tpu_custom_call.1} parent=5 // pred_check
        _
      $region10: #{tpu_custom_call.1} parent=5 // pred_check_branch
        %357 = sbr.rel (%p354) target = $region12
      $region11: #{tpu_custom_call.1} parent=5 // pred_region
        %s358 = ssub.s32 %s31, 1
        // Predicated region
        $region13: #{tpu_custom_call.1} parent=11 // pred_check
          %p359 = pneg %p208
        $region14: #{tpu_custom_call.1} parent=11 // pred_check_branch
          %361 = sbr.rel (%p359) target = $region16
        $region15: #{tpu_custom_call.1} parent=11 // pred_region
          %363 = vsyncadd [#allocation7], 0
          %s364 = sshll.u32 %s6, 4
          %s365 = int_to_ptr.hbm [resolvable:$true] %s364
          %s366 = sshll.u32 [#allocation6], 4
          %s367 = int_to_ptr.vmem [resolvable:$true] %s366
          %372 = dma.hbm_to_vmem [thread:$0]  %s365, 512, %s367, [#allocation7], 128, 128, 8
        $region16: #{tpu_custom_call.1} parent=11 // pred_fallthru
          _
        // Predicated region
        $region17: #{tpu_custom_call.1} parent=11 // pred_check
          %p373 = pneg %p229
        $region18: #{tpu_custom_call.1} parent=11 // pred_check_branch
          %375 = sbr.rel (%p373) target = $region20
        $region19: #{tpu_custom_call.1} parent=11 // pred_region
          _
        $region20: #{tpu_custom_call.1} parent=11 // pred_fallthru
          _
        // Predicated region
        $region21: #{tpu_custom_call.1} parent=11 // pred_check
          %p376 = pneg %p250
        $region22: #{tpu_custom_call.1} parent=11 // pred_check_branch
          %378 = sbr.rel (%p376) target = $region24
        $region23: #{tpu_custom_call.1} parent=11 // pred_region
          _
        $region24: #{tpu_custom_call.1} parent=11 // pred_fallthru
          _
        // Predicated region
        $region25: #{tpu_custom_call.1} parent=11 // pred_check
          %p379 = pneg %p271
        $region26: #{tpu_custom_call.1} parent=11 // pred_check_branch
          %381 = sbr.rel (%p379) target = $region28
        $region27: #{tpu_custom_call.1} parent=11 // pred_region
          _
        $region28: #{tpu_custom_call.1} parent=11 // pred_fallthru
          _
        // Predicated region
        $region29: #{tpu_custom_call.1} parent=11 // pred_check
          %p382 = pneg %p292
        $region30: #{tpu_custom_call.1} parent=11 // pred_check_branch
          %384 = sbr.rel (%p382) target = $region32
        $region31: #{tpu_custom_call.1} parent=11 // pred_region
          _
        $region32: #{tpu_custom_call.1} parent=11 // pred_fallthru
          _
      $region12: #{tpu_custom_call.1} parent=5 // pred_fallthru
        _
      %p385 = scmp.lt.s32.totalorder %s31, 2
      // Predicated region
      $region33: #{tpu_custom_call.1} parent=5 // pred_check
        %p386 = pneg %p385
      $region34: #{tpu_custom_call.1} parent=5 // pred_check_branch
        %388 = sbr.rel (%p386) target = $region36
      $region35: #{tpu_custom_call.1} parent=5 // pred_region
        // Predicated region
        $region37: #{tpu_custom_call.1} parent=35 // pred_check
          %p389 = pneg %p51
        $region38: #{tpu_custom_call.1} parent=35 // pred_check_branch
          %391 = sbr.rel (%p389) target = $region40
        $region39: #{tpu_custom_call.1} parent=35 // pred_region
          %p392 = scmp.lt.s32.totalorder %s31, 1
          %s393 = scalar_select %p392, %s31, 1
          %s394 = smul.addr %s393, 2
          %s395 = smul.addr %s394, 8
          %s396 = scalar_lea.vmem %s0, %s395
        $region40: #{tpu_custom_call.1} parent=35 // pred_fallthru
          _
        // Predicated region
        $region41: #{tpu_custom_call.1} parent=35 // pred_check
          %p397 = pneg %p77
        $region42: #{tpu_custom_call.1} parent=35 // pred_check_branch
          %399 = sbr.rel (%p397) target = $region44
        $region43: #{tpu_custom_call.1} parent=35 // pred_region
          %s400 = sand.u32 %s67, 1
          %s401 = scalar_lea.sflag [#allocation4], %s400
          %s402 = sand.u32 %s67, 1
          %s403 = smul.addr %s402, 16
          %s404 = scalar_lea.vmem [#allocation3], %s403
          %406 = vsyncadd %s401, 0
          %s407 = smul.addr %s31, 2
          %s408 = smul.addr %s407, 8
          %s409 = scalar_lea.hbm %s1, %s408
          %s410 = sshll.u32 %s409, 4
          %s411 = int_to_ptr.hbm [resolvable:$true] %s410
          %s412 = sshll.u32 %s404, 4
          %s413 = int_to_ptr.vmem [resolvable:$true] %s412
          %418 = dma.hbm_to_vmem [thread:$0]  %s411, 256, %s413, %s401, 128, 128, 8
        $region44: #{tpu_custom_call.1} parent=35 // pred_fallthru
          _
        // Predicated region
        $region45: #{tpu_custom_call.1} parent=35 // pred_check
          %p419 = pneg %p103
        $region46: #{tpu_custom_call.1} parent=35 // pred_check_branch
          %421 = sbr.rel (%p419) target = $region48
        $region47: #{tpu_custom_call.1} parent=35 // pred_region
          %p422 = scmp.lt.s32.totalorder %s31, 1
          %s423 = scalar_select %p422, %s31, 1
          %s424 = scalar_lea.vmem %s2, %s423
        $region48: #{tpu_custom_call.1} parent=35 // pred_fallthru
          _
        // Predicated region
        $region49: #{tpu_custom_call.1} parent=35 // pred_check
          %p425 = pneg %p129
        $region50: #{tpu_custom_call.1} parent=35 // pred_check_branch
          %427 = sbr.rel (%p425) target = $region52
        $region51: #{tpu_custom_call.1} parent=35 // pred_region
          %p428 = scmp.lt.s32.totalorder %s31, 1
          %s429 = scalar_select %p428, %s31, 1
          %s430 = smul.addr %s429, 2
          %s431 = smul.addr %s430, 8
          %s432 = scalar_lea.vmem %s3, %s431
        $region52: #{tpu_custom_call.1} parent=35 // pred_fallthru
          _
        // Predicated region
        $region53: #{tpu_custom_call.1} parent=35 // pred_check
          %p433 = pneg %p155
        $region54: #{tpu_custom_call.1} parent=35 // pred_check_branch
          %435 = sbr.rel (%p433) target = $region56
        $region55: #{tpu_custom_call.1} parent=35 // pred_region
          %p436 = scmp.lt.s32.totalorder %s31, 1
          %s437 = scalar_select %p436, %s31, 1
          %s438 = scalar_lea.vmem %s4, %s437
        $region56: #{tpu_custom_call.1} parent=35 // pred_fallthru
          _
        // Predicated region
        $region57: #{tpu_custom_call.1} parent=35 // pred_check
          %p439 = pneg %p181
        $region58: #{tpu_custom_call.1} parent=35 // pred_check_branch
          %441 = sbr.rel (%p439) target = $region60
        $region59: #{tpu_custom_call.1} parent=35 // pred_region
          %p442 = scmp.lt.s32.totalorder %s31, 1
          %s443 = scalar_select %p442, %s31, 1
          %s444 = scalar_lea.vmem %s5, %s443
        $region60: #{tpu_custom_call.1} parent=35 // pred_fallthru
          _
      $region36: #{tpu_custom_call.1} parent=5 // pred_fallthru
        _
      %p445 = scmp.le.s32.totalorder 1, %s31
      %p446 = scmp.lt.s32.totalorder %s31, 3
      %p447 = pnand %p445, %p446
      %p448 = pneg %p447
      // Predicated region
      $region61: #{tpu_custom_call.1} parent=5 // pred_check
        _
      $region62: #{tpu_custom_call.1} parent=5 // pred_check_branch
        %450 = sbr.rel (%p447) target = $region64
      $region63: #{tpu_custom_call.1} parent=5 // pred_region
        %s451 = ssub.s32 %s31, 1
        %s452 = sand.u32 %s70, 1
        %s453 = scalar_lea.sflag [#allocation4], %s452
        %s454 = sand.u32 %s70, 1
        %s455 = smul.addr %s454, 16
        %s456 = scalar_lea.vmem [#allocation3], %s455
        // Predicated region
        $region65: #{tpu_custom_call.1} parent=63 // pred_check
          %p457 = pneg %p83
        $region66: #{tpu_custom_call.1} parent=63 // pred_check_branch
          %459 = sbr.rel (%p457) target = $region68
        $region67: #{tpu_custom_call.1} parent=63 // pred_region
          %461 = dma.done %s453, 256
        $region68: #{tpu_custom_call.1} parent=63 // pred_fallthru
          _
        // Predicated region
        $region69: #{tpu_custom_call.1} parent=63 // pred_check
          %p462 = pneg %p208
        $region70: #{tpu_custom_call.1} parent=63 // pred_check_branch
          %464 = sbr.rel (%p462) target = $region72
        $region71: #{tpu_custom_call.1} parent=63 // pred_region
          %466 = dma.done [#allocation7], 512
        $region72: #{tpu_custom_call.1} parent=63 // pred_fallthru
          _
        %p467 = scmp.lt.s32.totalorder %s36, 1
        %s468 = scalar_select %p467, %s36, 1
        %s469 = smul.addr %s468, 2
        %s470 = smul.addr %s469, 8
        %s471 = scalar_lea.vmem %s0, %s470
        %p472 = pneg %p57
        %p473 = pneg %p54
        %s474 = sand.u32 %s70, 1
        %s475 = scalar_lea.sflag [#allocation4], %s474
        %s476 = sand.u32 %s70, 1
        %s477 = smul.addr %s476, 16
        %s478 = scalar_lea.vmem [#allocation3], %s477
        %p479 = pneg %p83
        %p480 = pneg %p80
        %p481 = scmp.lt.s32.totalorder %s36, 1
        %s482 = scalar_select %p481, %s36, 1
        %s483 = scalar_lea.vmem %s2, %s482
        %p484 = pneg %p109
        %p485 = pneg %p106
        %p486 = scmp.lt.s32.totalorder %s36, 1
        %s487 = scalar_select %p486, %s36, 1
        %s488 = smul.addr %s487, 2
        %s489 = smul.addr %s488, 8
        %s490 = scalar_lea.vmem %s3, %s489
        %p491 = pneg %p135
        %p492 = pneg %p132
        %p493 = scmp.lt.s32.totalorder %s36, 1
        %s494 = scalar_select %p493, %s36, 1
        %s495 = scalar_lea.vmem %s4, %s494
        %p496 = pneg %p161
        %p497 = pneg %p158
        %p498 = scmp.lt.s32.totalorder %s36, 1
        %s499 = scalar_select %p498, %s36, 1
        %s500 = scalar_lea.vmem %s5, %s499
        %p501 = pneg %p187
        %p502 = pneg %p184
        %p503 = pneg %p208
        %p504 = pneg %p205
        %p505 = pneg %p229
        %p506 = pneg %p226
        %p507 = pneg %p250
        %p508 = pneg %p247
        %p509 = pneg %p271
        %p510 = pneg %p268
        %p511 = pneg %p292
        %p512 = pneg %p289
        %p513 = pneg %p318
        %p514 = pneg %p315
        %s515 = sand.u32 %s305, 1
        %s516 = scalar_lea.sflag [#allocation5], %s515
        %s517 = sand.u32 %s305, 1
        %s518 = scalar_lea.vmem [#allocation8], %s517
        %p519 = pneg %p344
        %p520 = pneg %p341
        %s521 = sand.u32 %s331, 1
        %s522 = scalar_lea.sflag [#allocation10], %s521
        %s523 = sand.u32 %s331, 1
        %s524 = scalar_lea.vmem [#allocation9], %s523
        %p525 = scmp.lt.s32.totalorder %s36, 1
        %s526 = scalar_select %p525, %s36, 1
        %s527 = smul.addr %s526, 2
        %s528 = smul.addr %s527, 8
        %s529 = scalar_lea.vmem %s0, %s528
        %p530 = scmp.lt.s32.totalorder %s36, 1
        %s531 = scalar_select %p530, %s36, 1
        %s532 = scalar_lea.vmem %s2, %s531
        %p533 = scmp.lt.s32.totalorder %s36, 1
        %s534 = scalar_select %p533, %s36, 1
        %s535 = smul.addr %s534, 2
        %s536 = smul.addr %s535, 8
        %s537 = scalar_lea.vmem %s3, %s536
        %p538 = scmp.lt.s32.totalorder %s36, 1
        %s539 = scalar_select %p538, %s36, 1
        %s540 = scalar_lea.vmem %s4, %s539
        %p541 = scmp.lt.s32.totalorder %s36, 1
        %s542 = scalar_select %p541, %s36, 1
        %s543 = scalar_lea.vmem %s5, %s542
        %v544 = vld [vmem:[%s532] sm:$0x1]
        %v545 = vld [vmem:[#allocation6] sm:$0xff]
        %v546 = vld [vmem:[#allocation6 + $0x8] sm:$0xff]
        %v547 = vld [vmem:[#allocation6 + $0x10] sm:$0xff]
        %v548 = vld [vmem:[#allocation6 + $0x18] sm:$0xff]
        %v549 = vld [vmem:[%s7] sm:$0x1]
        %vm550 = vcmask 261120
        %v552 = vsel %vm550, %v544, 0
        %554 = vmatpush.msra.mxu0 0.0
        %555 = vmatpush.msra.mxu0 0.0
        %556 = vmatpush.msra.mxu0 0.0
        %557 = vmatpush.msra.mxu0 0.0
        %558 = vmatpush.msra.mxu0 0.0
        %559 = vmatpush.msra.mxu0 0.0
        %560 = vmatpush.msra.mxu0 0.0
        %561 = vmatpush.msra.mxu0 0.0
        %562 = vmatpush.msra.mxu0 0.0
        %563 = vmatpush.msra.mxu0 0.0
        %564 = vmatpush.msra.mxu0 0.0
        %565 = vmatpush.msra.mxu0 0.0
        %566 = vmatpush.msra.mxu0 %v548
        %567 = vmatpush.msra.mxu0 %v547
        %568 = vmatpush.msra.mxu0 %v546
        %569 = vmatpush.msra.mxu0 %v545
        %570 = vmatmul.f32.gmra.mxu0 %v552
        %v571 = vpop.f32.mrf.mxu0
        %v572 = vadd.f32 %v549, %v571
        %573 = vdwg.mxu0
        %v574 = vld [vmem:[%s537] sm:$0xff]
        %v575 = vld [vmem:[%s537 + $0x8] sm:$0xff]
        %v576 = vld [vmem:[%s8] sm:$0x7f]
        %vm577 = vcmask 56320
        %v579 = vsel %vm577, %v574, 0
        %v582 = vsel %vm577, %v575, 0
        %vm584 = vcmask 1046528
        %v586 = vsel %vm584, %v576, 0
        %588 = vmatpush.msra.mxu0 0.0
        %589 = vmatpush.msra.mxu0 0.0
        %590 = vmatpush.msra.mxu0 0.0
        %591 = vmatpush.msra.mxu0 0.0
        %592 = vmatpush.msra.mxu0 0.0
        %593 = vmatpush.msra.mxu0 0.0
        %594 = vmatpush.msra.mxu0 0.0
        %595 = vmatpush.msra.mxu0 0.0
        %596 = vmatpush.msra.mxu0 0.0
        %597 = vmatpush.msra.mxu0 0.0
        %598 = vmatpush.msra.mxu0 0.0
        %599 = vmatpush.msra.mxu0 0.0
        %600 = vmatpush.msra.mxu0 0.0
        %601 = vmatpush.msra.mxu0 0.0
        %602 = vmatpush.msra.mxu0 0.0
        %603 = vmatpush.msra.mxu0 %v586
        %604 = vmatmul.f32.gmra.mxu0 %v579
        %v605 = vpop.f32.mrf.mxu0
        %v606 = vadd.f32 0.0, %v605
        %607 = vmatmul.f32.gmra.mxu0 %v582
        %v608 = vpop.f32.mrf.mxu0
        %v609 = vadd.f32 0.0, %v608
        %610 = vdwg.mxu0
        %v611 = vld [vmem:[%s529] sm:$0xff]
        %v612 = vld [vmem:[%s529 + $0x8] sm:$0xff]
        %v613 = vadd.f32 %v611, %v606
        %v614 = vadd.f32 %v612, %v609
        %v615 = vperm.slane %v572, 0
        %v616 = vadd.f32 %v613, %v615
        %v617 = vadd.f32 %v614, %v615
        %v618 = vtanh.pop %v616
        %v619 = vtanh.pop %v617
        %v620 = vld [vmem:[%s9] sm:$0x1]
        %v622 = vperm.slane %v620, 0
        %v624 = vmul.f32 %v618, %v622
        %v625 = vmul.f32 %v619, %v622
        %v626 = vsel %vm550, %v624, 0.0
        %627 = vadd.xlane.f32.xlu0 %v626
        %v628 = vpop.xlane.xlu0 %627
        %v629 = vsel %vm550, %v625, 0.0
        %630 = vadd.xlane.f32.xlu0 %v629
        %v631 = vpop.xlane.xlu0 %630
        %v632 = vld [vmem:[#allocation2] sm:$0x1]
        %634 = vset.pattern.permute.xlu0 0
        %635 = vperm.xlu0 %634, %v632
        %v636 = vpop.permute.xlu0 %635
        %v638 = vperm.slane %v636, 0
        %v639 = vadd.f32 %v628, %v638
        %v640 = vadd.f32 %v631, %v638
        %v641 = vld [vmem:[%s543] sm:$0x1]
        %vm642 = vcmp.gt.f32.partialorder %v641, 0.5
        %v645 = vperm.slane %v639, 0
        %v646 = vperm.slane %v639, 1
        %v647 = vperm.slane %v639, 2
        %v648 = vperm.slane %v639, 3
        %v649 = vperm.slane %v639, 4
        %v650 = vperm.slane %v639, 5
        %v651 = vperm.slane %v639, 6
        %v652 = vperm.slane %v639, 7
        %v653 = vperm.slane %v640, 0
        %v654 = vperm.slane %v640, 1
        %v655 = vperm.slane %v640, 2
        %v656 = vperm.slane %v640, 3
        %v657 = vperm.slane %v640, 4
        %v658 = vperm.slane %v640, 5
        %v659 = vperm.slane %v640, 6
        %v660 = vperm.slane %v640, 7
        %661 = vst [vmem:[#allocation1] ss:$9 sm:$0xff] %v645
        %s662 = scalar_lea.vmem [#allocation1], 1
        %663 = vst [vmem:[%s662] ss:$9 sm:$0xff] %v646
        %s664 = scalar_lea.vmem [#allocation1], 2
        %665 = vst [vmem:[%s664] ss:$9 sm:$0xff] %v647
        %s666 = scalar_lea.vmem [#allocation1], 3
        %667 = vst [vmem:[%s666] ss:$9 sm:$0xff] %v648
        %s668 = scalar_lea.vmem [#allocation1], 4
        %669 = vst [vmem:[%s668] ss:$9 sm:$0xff] %v649
        %s670 = scalar_lea.vmem [#allocation1], 5
        %671 = vst [vmem:[%s670] ss:$9 sm:$0xff] %v650
        %s672 = scalar_lea.vmem [#allocation1], 6
        %673 = vst [vmem:[%s672] ss:$9 sm:$0xff] %v651
        %s674 = scalar_lea.vmem [#allocation1], 7
        %675 = vst [vmem:[%s674] ss:$9 sm:$0xff] %v652
        %v676 = vld [vmem:[#allocation1] sm:$0xff]
        %677 = vst [vmem:[#allocation1] ss:$9 sm:$0xff] %v653
        %678 = vst [vmem:[%s662] ss:$9 sm:$0xff] %v654
        %679 = vst [vmem:[%s664] ss:$9 sm:$0xff] %v655
        %680 = vst [vmem:[%s666] ss:$9 sm:$0xff] %v656
        %681 = vst [vmem:[%s668] ss:$9 sm:$0xff] %v657
        %682 = vst [vmem:[%s670] ss:$9 sm:$0xff] %v658
        %683 = vst [vmem:[%s672] ss:$9 sm:$0xff] %v659
        %684 = vst [vmem:[%s674] ss:$9 sm:$0xff] %v660
        %v685 = vld [vmem:[#allocation1] sm:$0xff]
        %686 = vset.pattern.permute.xlu0 0
        %687 = vperm.xlu0 %686, %v676
        %v688 = vpop.permute.xlu0 %687
        %689 = vset.pattern.permute.xlu0 0
        %690 = vperm.xlu0 %689, %v685
        %v691 = vpop.permute.xlu0 %690
        %v692 = vlaneseq
        %v693 = vand.u32 %v692, 127
        %v694 = vperm.slane %v688, %v693
        %v695 = vadd.s32 %v693, 4294967288
        %v696 = vperm.slane %v691, %v695
        %vm697 = vcmask 130112
        %v698 = vsel %vm697, %v696, %v694
        %v700 = vsel %vm642, %v698, -1e+30
        %vm701 = vcmask 122880
        %v702 = vsel %vm701, %v700, -inf
        %703 = vmax.xlane.f32.xlu0 %v702
        %v704 = vpop.xlane.xlu0 %703
        %v705 = vsub.f32 %v700, %v704
        %v706 = vmul.f32 %v705, 1.442695
        %v707 = vpow.pop %v706
        %v708 = vsel %vm701, %v707, 0.0
        %709 = vadd.xlane.f32.xlu0 %v708
        %v710 = vpop.xlane.xlu0 %709
        %v711 = vrcp.pop %v710
        %v712 = vmul.f32 %v707, %v711
        %v713 = vld [vmem:[%s540] sm:$0x1]
        %v714 = vmul.f32 %v713, %v712
        %v715 = vmax.f32 %v714, 1e-06
        %v716 = vsel %vm701, %v715, 0.0
        %717 = vadd.xlane.f32.xlu0 %v716
        %v718 = vpop.xlane.xlu0 %717
        %v719 = vrcp.pop %v718
        %v720 = vmul.f32 %v718, %v719
        %v721 = vsub.f32 1.0, %v720
        %v722 = vmul.f32 %v719, %v721
        %v723 = vadd.f32 %v719, %v722
        %vm724 = vweird.f32 %v718
        %vm725 = vweird.f32 %v719
        %vm726 = vmor %vm724, %vm725
        %v727 = vsel %vm726, %v719, %v723
        %v728 = vand.u32 2147483647, %v718
        %vm729 = vcmp.eq.f32.partialorder %v728, 8.507059e+37
        %v730 = vand.u32 %v718, 2147483648
        %v731 = vor.u32 1.1754944e-38, %v730
        %v732 = vsel %vm729, %v731, %v727
        %v733 = vmul.f32 %v715, %v732
        %v734 = vld [vmem:[%s456] sm:$0xff]
        %v735 = vld [vmem:[%s456 + $0x8] sm:$0xff]
        %vm736 = vcmask 130048
        %v738 = vsel %vm736, %v733, 0
        %740 = vmatpush.msra.mxu0 0.0
        %741 = vmatpush.msra.mxu0 0.0
        %742 = vmatpush.msra.mxu0 0.0
        %743 = vmatpush.msra.mxu0 0.0
        %744 = vmatpush.msra.mxu0 0.0
        %745 = vmatpush.msra.mxu0 0.0
        %746 = vmatpush.msra.mxu0 0.0
        %747 = vmatpush.msra.mxu0 0.0
        %748 = vmatpush.msra.mxu0 0.0
        %749 = vmatpush.msra.mxu0 0.0
        %750 = vmatpush.msra.mxu0 0.0
        %751 = vmatpush.msra.mxu0 0.0
        %752 = vmatpush.msra.mxu0 0.0
        %753 = vmatpush.msra.mxu0 0.0
        %754 = vmatpush.msra.mxu0 %v735
        %755 = vmatpush.msra.mxu0 %v734
        %756 = vmatmul.f32.gmra.mxu0 %v738
        %v757 = vpop.f32.mrf.mxu0
        %v758 = vadd.f32 0.0, %v757
        %759 = vdwg.mxu0
        %vm760 = vcmask 253952
        %761 = vst.msk [vmem:[%s518] sm:$0x1] %vm760, %v758
        %762 = vst.msk [vmem:[%s524] sm:$0x1] %vm701, %v733
        %s763 = sand.u32 %s305, 1
        %s764 = scalar_lea.sflag [#allocation5], %s763
        %s765 = sand.u32 %s305, 1
        %s766 = scalar_lea.vmem [#allocation8], %s765
        %s767 = sand.u32 %s331, 1
        %s768 = scalar_lea.sflag [#allocation10], %s767
        %s769 = sand.u32 %s331, 1
        %s770 = scalar_lea.vmem [#allocation9], %s769
        // Predicated region
        $region73: #{tpu_custom_call.1} parent=63 // pred_check
          %p771 = pneg %p315
        $region74: #{tpu_custom_call.1} parent=63 // pred_check_branch
          %773 = sbr.rel (%p771) target = $region76
        $region75: #{tpu_custom_call.1} parent=63 // pred_region
          %775 = vsyncadd %s764, 0
          %s776 = scalar_lea.hbm %s11, %s36
          %s778 = sshll.u32 %s766, 4
          %s779 = int_to_ptr.vmem [resolvable:$true] %s778
          %s780 = sshll.u32 %s776, 4
          %s781 = int_to_ptr.hbm [resolvable:$true] %s780
          %783 = dma.vmem_to_hbm [thread:$0]  %s779, 16, %s781, %s764
        $region76: #{tpu_custom_call.1} parent=63 // pred_fallthru
          _
        // Predicated region
        $region77: #{tpu_custom_call.1} parent=63 // pred_check
          %p784 = pneg %p341
        $region78: #{tpu_custom_call.1} parent=63 // pred_check_branch
          %786 = sbr.rel (%p784) target = $region80
        $region79: #{tpu_custom_call.1} parent=63 // pred_region
          %788 = vsyncadd %s768, 0
          %s789 = scalar_lea.hbm %s12, %s36
          %s791 = sshll.u32 %s770, 4
          %s792 = int_to_ptr.vmem [resolvable:$true] %s791
          %s793 = sshll.u32 %s789, 4
          %s794 = int_to_ptr.hbm [resolvable:$true] %s793
          %796 = dma.vmem_to_hbm [thread:$0]  %s792, 16, %s794, %s768
        $region80: #{tpu_custom_call.1} parent=63 // pred_fallthru
          _
      $region64: #{tpu_custom_call.1} parent=5 // pred_fallthru
        _
      %p797 = scmp.le.s32.totalorder 2, %s31
      // Predicated region
      $region81: #{tpu_custom_call.1} parent=5 // pred_check
        %p798 = pneg %p797
      $region82: #{tpu_custom_call.1} parent=5 // pred_check_branch
        %800 = sbr.rel (%p798) target = $region84
      $region83: #{tpu_custom_call.1} parent=5 // pred_region
        %s801 = ssub.s32 %s31, 2
        // Predicated region
        $region85: #{tpu_custom_call.1} parent=83 // pred_check
          %p802 = pneg %p321
        $region86: #{tpu_custom_call.1} parent=83 // pred_check_branch
          %804 = sbr.rel (%p802) target = $region88
        $region87: #{tpu_custom_call.1} parent=83 // pred_region
          %s805 = sand.u32 %s306, 1
          %s806 = scalar_lea.sflag [#allocation5], %s805
          %s807 = sand.u32 %s306, 1
          %s808 = scalar_lea.vmem [#allocation8], %s807
          %810 = dma.done %s806, 16
        $region88: #{tpu_custom_call.1} parent=83 // pred_fallthru
          _
        // Predicated region
        $region89: #{tpu_custom_call.1} parent=83 // pred_check
          %p811 = pneg %p347
        $region90: #{tpu_custom_call.1} parent=83 // pred_check_branch
          %813 = sbr.rel (%p811) target = $region92
        $region91: #{tpu_custom_call.1} parent=83 // pred_region
          %s814 = sand.u32 %s332, 1
          %s815 = scalar_lea.sflag [#allocation10], %s814
          %s816 = sand.u32 %s332, 1
          %s817 = scalar_lea.vmem [#allocation9], %s816
          %819 = dma.done %s815, 16
        $region92: #{tpu_custom_call.1} parent=83 // pred_fallthru
          _
      $region84: #{tpu_custom_call.1} parent=5 // pred_fallthru
        _
    $region6: #{tpu_custom_call.1} parent=1 // loop_footer
      %s35 = sadd.s32 1, %s31
    $region7: #{tpu_custom_call.1} parent=1 // loop_footer_branch
      %30 = sbr.rel target = $region3
    $region8: #{tpu_custom_call.1} parent=1 // loop_exit
      _
    %820 = vsyncpa [#allocation4], 1
    %s821 = scalar_lea.sflag [#allocation4], 1
    %822 = vsyncpa %s821, 1
    %823 = vsyncpa [#allocation7], 1
    %824 = vsyncpa [#allocation5], 1
    %s825 = scalar_lea.sflag [#allocation5], 1
    %826 = vsyncpa %s825, 1
    %827 = vsyncpa [#allocation10], 1
    %s828 = scalar_lea.sflag [#allocation10], 1
    %829 = vsyncpa %s828, 1

</llo_original>
